<compile_context>
chip_gen: v7x
topology: tpu7x:2x2x1
jax: 0.10.0
libtpu: 0.0.40
codegen_flags: <defaults>
</compile_context>

<pallas_src>
import jax
import jax.numpy as jnp
from jax.experimental import pallas as pl
from jax.experimental.pallas import tpu as pltpu

_LANE = 128
_MAX_TILE_LANES = 65536          # cap on lanes streamed per grid step
_FASTPATH_BYTES = 1 << 20        # below this, XLA's fused reduce beats a launch
_MAX_KERNEL_ROWS = 64            # keep carries + operand chunks <= ~48 vregs
_UNROLL = 8                      # chunks per fori-loop group


def _prod(xs):
    r = 1
    for x in xs:
        r *= int(x)
    return r


def _dice_vxm_ref(y_pred, y_true):
    """Pure-JAX reference mirroring the PyTorch forward (also the fast path)."""
    ndims = y_pred.ndim - 2
    vol_axes = tuple(range(2, ndims + 2))
    yp = y_pred.astype(jnp.float32)
    yt = y_true.astype(jnp.float32)
    top = 2.0 * jnp.sum(yt * yp, axis=vol_axes)
    bottom = jnp.maximum(jnp.sum(yt + yp, axis=vol_axes), 1e-5)
    dice = jnp.mean(top / bottom)
    return 1.0 - dice


def _vmem_limit_bytes():
    """Generation-aware scoped-VMEM request (128 MiB phys on v5e/v6e, 64 MiB/TC on v7x)."""
    cap = 64 * 1024 * 1024
    try:
        cap = int(pltpu.get_tpu_info().vmem_capacity_bytes) or cap
    except Exception:
        pass
    return int(min(cap * 3 // 4, 96 * 1024 * 1024))


def _default_num_splits():
    """Use the 'parallel' column split (megacore sharding) only on 2-TC chips (v7x)."""
    try:
        kind = jax.devices()[0].device_kind.lower()
    except Exception:
        return 1
    return 2 if ("v7" in kind or "7x" in kind) else 1


def _pick_pack(bc, spatial, sub):
    """Fold spatial into `pack` sub-rows per (b, c) so vreg sublanes are filled.
    Only divisors of `spatial` are allowed: the reshape stays a free bitcast
    (no padded HBM copy)."""
    if bc >= sub:
        return 1
    best_p, best_score = 1, (-1, -1)
    max_p = min(max(1, (2 * sub) // bc), spatial)
    for p in range(1, max_p + 1):
        if spatial % p:
            continue
        r = bc * p
        score = (1 if r % sub == 0 else 0, 1 if r >= sub else 0)
        if score > best_score:
            best_p, best_score = p, score
    return best_p


def _pick_tile(cols, bytes_per_lane, budget):
    """Largest lane tile (multiple of 128) whose double-buffered two-input
    footprint fits `budget`.  Exact divisors of `cols` are only taken when they
    are still large DMAs; the ragged tail is handled in the wrapper."""
    if cols < _LANE:
        return 0
    cap = budget // (2 * bytes_per_lane)        # 2 pipeline buffers per input
    cap = min(cap, _MAX_TILE_LANES)
    cap -= cap % _LANE
    if cap < _LANE:
        return 0
    if cols <= cap:
        return (cols // _LANE) * _LANE
    min_div = max((cap // 4) // _LANE * _LANE, 4096)
    for cand in range(cap, min_div - 1, -_LANE):
        if cols % cand == 0:
            return cand
    return cap


def _make_dice_kernel(ts, acc_w, unroll):
    nchunk = ts // acc_w
    n_groups, rem = divmod(nchunk, unroll)

    def kernel(yp_ref, yt_ref, prod_ref, add_ref):
        @pl.when(pl.program_id(1) == 0)
        def _init():
            prod_ref[...] = jnp.zeros_like(prod_ref)
            add_ref[...] = jnp.zeros_like(add_ref)

        def chunk(carry, lo):
            p_acc, a_acc = carry
            # Hot loop is pure vld + convert + vmul/vadd; the single cross-lane
            # XLU reduce happens in the wrapper on the tiny partials.
            yp = yp_ref[:, pl.ds(lo, acc_w)].astype(jnp.float32)
            yt = yt_ref[:, pl.ds(lo, acc_w)].astype(jnp.float32)
            return p_acc + yt * yp, a_acc + (yt + yp)

        carry = (prod_ref[...], add_ref[...])

        if n_groups > 0:
            # Bounded live ranges: fori_loop over groups of `unroll` chunks.
            def group(g, c):
                base = pl.multiple_of(g * (unroll * acc_w), acc_w)
                for u in range(unroll):
                    c = chunk(c, base + u * acc_w)
                return c

            carry = jax.lax.fori_loop(0, n_groups, group, carry)

        for u in range(rem):                     # static remainder chunks
            carry = chunk(carry, (n_groups * unroll + u) * acc_w)

        p_acc, a_acc = carry
        prod_ref[...] = p_acc
        add_ref[...] = a_acc

    return kernel


def dice_vxm(y_pred, y_true, *, spatial_tile=None, num_splits=None,
             force_kernel=False):
    """Pallas implementation of Dice_vxm.forward(y_pred, y_true) -> scalar."""
    assert y_pred.shape == y_true.shape, (y_pred.shape, y_true.shape)
    assert y_pred.ndim >= 2, "expect (B, C, *spatial)"
    b, c = y_pred.shape[0], y_pred.shape[1]
    spatial = _prod(y_pred.shape[2:])
    bc = b * c

    # Keep bf16/f16 on the wire (half the HBM bytes); everything else -> f32.
    def _as_float(x):
        if jnp.issubdtype(x.dtype, jnp.floating) and x.dtype.itemsize <= 4:
            return x
        return x.astype(jnp.float32)

    y_pred = _as_float(y_pred)
    y_true = _as_float(y_true)
    isp, ist = y_pred.dtype.itemsize, y_true.dtype.itemsize

    total_bytes = bc * spatial * (isp + ist)
    if not force_kernel and (total_bytes < _FASTPATH_BYTES
                             or bc > _MAX_KERNEL_ROWS):
        # Launch/finalize overhead dominates tiny inputs; very large B*C would
        # blow vreg pressure in the lane-accumulator scheme.
        return _dice_vxm_ref(y_pred, y_true).astype(jnp.float32)

    # Sublane packing: fill the narrowest dtype's sublane tile (8 f32 / 16 bf16).
    sub = max(8, 32 // min(isp, ist))
    pack = _pick_pack(bc, spatial, sub)
    rows = bc * pack
    cols = spatial // pack
    bytes_per_lane = rows * (isp + ist)

    vmem_limit = _vmem_limit_bytes()
    budget = vmem_limit * 2 // 3            # headroom for accumulators + scratch

    if spatial_tile is None:
        ts = _pick_tile(cols, bytes_per_lane, budget)
    else:
        ts = int(spatial_tile)
        if ts % _LANE != 0:
            raise ValueError("spatial_tile must be a multiple of 128")
        if 2 * bytes_per_lane * ts > budget:
            raise ValueError("spatial_tile too large for the VMEM budget")

    n_tiles = cols // ts if ts > 0 else 0
    if n_tiles == 0:
        # Nothing wide enough to stream through the kernel.
        return _dice_vxm_ref(y_pred, y_true).astype(jnp.float32)

    nsplits = _default_num_splits() if num_splits is None else int(num_splits)
    nsplits = max(1, min(nsplits, n_tiles))
    steps = n_tiles // nsplits
    cols_main = nsplits * steps * ts        # kernel-covered prefix (full tiles)
    tail = cols - cols_main                 # ragged remainder -> tiny JAX reduce

    # Accumulator width bounded by rows: 2 carries + 2 operand chunks stay
    # comfortably inside the 64-vreg file.
    acc_target = max(_LANE, min(512, (4096 // max(rows, 1)) // _LANE * _LANE))
    acc_w = _LANE
    for cand in (512, 256, 128):
        if cand <= acc_target and ts % cand == 0:
            acc_w = cand
            break

    yp2d = y_pred.reshape(rows, cols)       # free bitcast: pack divides spatial
    yt2d = y_true.reshape(rows, cols)

    kernel = _make_dice_kernel(ts, acc_w, _UNROLL)
    out_sds = jax.ShapeDtypeStruct((nsplits, rows, acc_w), jnp.float32)
    cost = pl.CostEstimate(
        flops=3 * rows * cols_main,
        transcendentals=0,
        bytes_accessed=rows * cols_main * (isp + ist)
        + 2 * nsplits * rows * acc_w * 4,
    )

    prod_out, add_out = pl.pallas_call(
        kernel,
        out_shape=(out_sds, out_sds),
        grid_spec=pltpu.PrefetchScalarGridSpec(
            num_scalar_prefetch=0,
            grid=(nsplits, steps),
            in_specs=[
                pl.BlockSpec((rows, ts), lambda s, k: (0, s * steps + k)),
                pl.BlockSpec((rows, ts), lambda s, k: (0, s * steps + k)),
            ],
            out_specs=[
                pl.BlockSpec((None, rows, acc_w), lambda s, k: (s, 0, 0)),
                pl.BlockSpec((None, rows, acc_w), lambda s, k: (s, 0, 0)),
            ],
        ),
        compiler_params=pltpu.CompilerParams(
            dimension_semantics=("parallel", "arbitrary"),
            vmem_limit_bytes=vmem_limit,
        ),
        cost_estimate=cost,
    )(yp2d, yt2d)

    # Finalize on tiny partials: splits + lanes, ragged tail, pack fold, mean.
    sp = prod_out.sum(axis=(0, 2))
    sa = add_out.sum(axis=(0, 2))
    if tail:
        tp32 = yp2d[:, cols_main:].astype(jnp.float32)
        tt32 = yt2d[:, cols_main:].astype(jnp.float32)
        sp = sp + (tt32 * tp32).sum(axis=-1)
        sa = sa + (tt32 + tp32).sum(axis=-1)
    sp = sp.reshape(bc, pack).sum(axis=1)
    sa = sa.reshape(bc, pack).sum(axis=1)
    top = 2.0 * sp
    bottom = jnp.maximum(sa, 1e-5)          # torch.clamp(min=1e-5)
    dice = jnp.mean(top / bottom)
    return (1.0 - dice).astype(jnp.float32)


if __name__ == "__main__":
    key = jax.random.PRNGKey(0)
    k1, k2, k3, k4, k5, k6 = jax.random.split(key, 6)

    def _check(loss, ref, tol):
        assert jnp.allclose(loss, ref, atol=tol, rtol=tol), (loss, ref)

    # 1) bc >= 8, f32, single-tile kernel path (no packing, no tail)
    yp1 = jax.nn.sigmoid(jax.random.normal(k1, (2, 4, 32, 32), jnp.float32))
    yt1 = (jax.random.uniform(k2, (2, 4, 32, 32)) > 0.5).astype(jnp.float32)
    l1 = jax.block_until_ready(dice_vxm(yp1, yt1, force_kernel=True))
    _check(l1, _dice_vxm_ref(yp1, yt1), 1e-5)

    # 2) small bc -> sublane packing; odd 3-D spatial -> wrapper-side ragged tail
    yp2 = jax.nn.sigmoid(jax.random.normal(k3, (1, 2, 12, 10, 7), jnp.float32))
    yt2 = (jax.random.uniform(k4, (1, 2, 12, 10, 7)) > 0.5).astype(jnp.float32)
    l2 = jax.block_until_ready(dice_vxm(yp2, yt2, force_kernel=True))
    _check(l2, _dice_vxm_ref(yp2, yt2), 1e-5)

    # 3) multi-step reduction grid (accumulator init/carry across k) + tail
    yp3 = jax.nn.sigmoid(jax.random.normal(k5, (1, 1, 63, 65), jnp.float32))
    yt3 = (jax.random.uniform(k6, (1, 1, 63, 65)) > 0.5).astype(jnp.float32)
    l3 = jax.block_until_ready(
        dice_vxm(yp3, yt3, spatial_tile=128, force_kernel=True))
    _check(l3, _dice_vxm_ref(yp3, yt3), 1e-5)

    # 4) bf16 inputs: 16-sublane packing, f32 accumulation
    yp4 = jax.nn.sigmoid(
        jax.random.normal(k1, (1, 2, 16, 16, 16), jnp.float32)).astype(jnp.bfloat16)
    yt4 = (jax.random.uniform(k2, (1, 2, 16, 16, 16)) > 0.5).astype(jnp.bfloat16)
    l4 = jax.block_until_ready(dice_vxm(yp4, yt4, force_kernel=True))
    _check(l4, _dice_vxm_ref(yp4, yt4), 1e-4)

    # 5) wide spatial: exercises the fori-loop chunk accumulation path
    yp5 = jax.nn.sigmoid(jax.random.normal(k3, (2, 4, 32, 32, 16), jnp.float32))
    yt5 = (jax.random.uniform(k4, (2, 4, 32, 32, 16)) > 0.5).astype(jnp.float32)
    l5 = jax.block_until_ready(dice_vxm(yp5, yt5, force_kernel=True))
    _check(l5, _dice_vxm_ref(yp5, yt5), 1e-5)

    print("KERNEL_OK")
</pallas_src>

<mosaic_0001>
module attributes {stable_mosaic.version = 11 : i64} {
  func.func @kernel(%arg0: i32, %arg1: i32, %arg2: memref<8x1024xf32, #tpu.memory_space<vmem>>, %arg3: memref<8x1024xf32, #tpu.memory_space<vmem>>, %arg4: memref<1x8x512xf32, #tpu.memory_space<vmem>>, %arg5: memref<1x8x512xf32, #tpu.memory_space<vmem>>) attributes {dimension_semantics = [#tpu.dimension_semantics<parallel>, #tpu.dimension_semantics<arbitrary>], iteration_bounds = array<i64: 1, 1>, scalar_prefetch = 0 : i64, scratch_operands = 0 : i64, tpu.core_type = #tpu.core_type<tc>, window_params = [{transform_indices = @transform_0, window_bounds = array<i64: 8, 1024>}, {transform_indices = @transform_1, window_bounds = array<i64: 8, 1024>}, {transform_indices = @transform_2, window_bounds = array<i64: 1, 8, 512>}, {transform_indices = @transform_3, window_bounds = array<i64: 1, 8, 512>}]} {
    %c0_i32 = arith.constant 0 : i32
    %0 = arith.cmpi eq, %arg1, %c0_i32 : i32
    %1 = arith.extui %0 : i1 to i32
    %c0_i32_0 = arith.constant 0 : i32
    %2 = arith.cmpi ne, %1, %c0_i32_0 : i32
    scf.if %2 {
      %cst = arith.constant 0.000000e+00 : f32
      %25 = vector.broadcast %cst : f32 to vector<8x512xf32>
      %c0_19 = arith.constant 0 : index
      %c0_20 = arith.constant 0 : index
      %c0_21 = arith.constant 0 : index
      %26 = vector.load %arg4[%c0_19, %c0_20, %c0_21] : memref<1x8x512xf32, #tpu.memory_space<vmem>>, vector<1x8x512xf32>
      %27 = vector.shape_cast %26 : vector<1x8x512xf32> to vector<8x512xf32>
      %28 = vector.shape_cast %25 : vector<8x512xf32> to vector<1x8x512xf32>
      tpu.vector_store %arg4[%c0_19, %c0_20, %c0_21], %28 {strides = array<i32>} : memref<1x8x512xf32, #tpu.memory_space<vmem>>, vector<1x8x512xf32>,
      %cst_22 = arith.constant 0.000000e+00 : f32
      %29 = vector.broadcast %cst_22 : f32 to vector<8x512xf32>
      %c0_23 = arith.constant 0 : index
      %c0_24 = arith.constant 0 : index
      %c0_25 = arith.constant 0 : index
      %30 = vector.load %arg5[%c0_23, %c0_24, %c0_25] : memref<1x8x512xf32, #tpu.memory_space<vmem>>, vector<1x8x512xf32>
      %31 = vector.shape_cast %30 : vector<1x8x512xf32> to vector<8x512xf32>
      %32 = vector.shape_cast %29 : vector<8x512xf32> to vector<1x8x512xf32>
      tpu.vector_store %arg5[%c0_23, %c0_24, %c0_25], %32 {strides = array<i32>} : memref<1x8x512xf32, #tpu.memory_space<vmem>>, vector<1x8x512xf32>,
    } else {
    }
    %c0 = arith.constant 0 : index
    %c0_1 = arith.constant 0 : index
    %c0_2 = arith.constant 0 : index
    %3 = vector.load %arg4[%c0, %c0_1, %c0_2] : memref<1x8x512xf32, #tpu.memory_space<vmem>>, vector<1x8x512xf32>
    %4 = vector.shape_cast %3 : vector<1x8x512xf32> to vector<8x512xf32>
    %c0_3 = arith.constant 0 : index
    %c0_4 = arith.constant 0 : index
    %c0_5 = arith.constant 0 : index
    %5 = vector.load %arg5[%c0_3, %c0_4, %c0_5] : memref<1x8x512xf32, #tpu.memory_space<vmem>>, vector<1x8x512xf32>
    %6 = vector.shape_cast %5 : vector<1x8x512xf32> to vector<8x512xf32>
    %c0_6 = arith.constant 0 : index
    %c0_7 = arith.constant 0 : index
    %7 = vector.load %arg2[%c0_6, %c0_7] : memref<8x1024xf32, #tpu.memory_space<vmem>>, vector<8x512xf32>
    %c0_8 = arith.constant 0 : index
    %c0_9 = arith.constant 0 : index
    %8 = vector.load %arg3[%c0_8, %c0_9] : memref<8x1024xf32, #tpu.memory_space<vmem>>, vector<8x512xf32>
    %9 = arith.mulf %8, %7 : vector<8x512xf32>
    %10 = arith.addf %4, %9 : vector<8x512xf32>
    %11 = arith.addf %8, %7 : vector<8x512xf32>
    %12 = arith.addf %6, %11 : vector<8x512xf32>
    %c0_10 = arith.constant 0 : index
    %c512 = arith.constant 512 : index
    %13 = vector.load %arg2[%c0_10, %c512] : memref<8x1024xf32, #tpu.memory_space<vmem>>, vector<8x512xf32>
    %c0_11 = arith.constant 0 : index
    %c512_12 = arith.constant 512 : index
    %14 = vector.load %arg3[%c0_11, %c512_12] : memref<8x1024xf32, #tpu.memory_space<vmem>>, vector<8x512xf32>
    %15 = arith.mulf %14, %13 : vector<8x512xf32>
    %16 = arith.addf %10, %15 : vector<8x512xf32>
    %17 = arith.addf %14, %13 : vector<8x512xf32>
    %18 = arith.addf %12, %17 : vector<8x512xf32>
    %c0_13 = arith.constant 0 : index
    %c0_14 = arith.constant 0 : index
    %c0_15 = arith.constant 0 : index
    %19 = vector.load %arg4[%c0_13, %c0_14, %c0_15] : memref<1x8x512xf32, #tpu.memory_space<vmem>>, vector<1x8x512xf32>
    %20 = vector.shape_cast %19 : vector<1x8x512xf32> to vector<8x512xf32>
    %21 = vector.shape_cast %16 : vector<8x512xf32> to vector<1x8x512xf32>
    tpu.vector_store %arg4[%c0_13, %c0_14, %c0_15], %21 {strides = array<i32>} : memref<1x8x512xf32, #tpu.memory_space<vmem>>, vector<1x8x512xf32>,
    %c0_16 = arith.constant 0 : index
    %c0_17 = arith.constant 0 : index
    %c0_18 = arith.constant 0 : index
    %22 = vector.load %arg5[%c0_16, %c0_17, %c0_18] : memref<1x8x512xf32, #tpu.memory_space<vmem>>, vector<1x8x512xf32>
    %23 = vector.shape_cast %22 : vector<1x8x512xf32> to vector<8x512xf32>
    %24 = vector.shape_cast %18 : vector<8x512xf32> to vector<1x8x512xf32>
    tpu.vector_store %arg5[%c0_16, %c0_17, %c0_18], %24 {strides = array<i32>} : memref<1x8x512xf32, #tpu.memory_space<vmem>>, vector<1x8x512xf32>,
    return
  }
  func.func @transform_0(%arg0: i32, %arg1: i32) -> (i32, i32) {
    %c1_i32 = arith.constant 1 : i32
    %0 = arith.muli %arg0, %c1_i32 : i32
    %1 = arith.addi %0, %arg1 : i32
    %c0_i32 = arith.constant 0 : i32
    %c0_i32_0 = arith.constant 0 : i32
    return %c0_i32, %1 : i32, i32
  }
  func.func @transform_1(%arg0: i32, %arg1: i32) -> (i32, i32) {
    %c1_i32 = arith.constant 1 : i32
    %0 = arith.muli %arg0, %c1_i32 : i32
    %1 = arith.addi %0, %arg1 : i32
    %c0_i32 = arith.constant 0 : i32
    %c0_i32_0 = arith.constant 0 : i32
    return %c0_i32, %1 : i32, i32
  }
  func.func @transform_2(%arg0: i32, %arg1: i32) -> (i32, i32, i32) {
    %c0_i32 = arith.constant 0 : i32
    %c0_i32_0 = arith.constant 0 : i32
    %c0_i32_1 = arith.constant 0 : i32
    return %arg0, %c0_i32, %c0_i32_0 : i32, i32, i32
  }
  func.func @transform_3(%arg0: i32, %arg1: i32) -> (i32, i32, i32) {
    %c0_i32 = arith.constant 0 : i32
    %c0_i32_0 = arith.constant 0 : i32
    %c0_i32_1 = arith.constant 0 : i32
    return %arg0, %c0_i32, %c0_i32_0 : i32, i32, i32
  }
}

</mosaic_0001>

<llo_original>
// kernel: tpu_custom_call.1
$region0: #{tpu_custom_call.1}
  #allocation0 [shape = 'u32[]', space=smem, size = 0x4, offset = 0x4, fixed_abs, tag = 'smem constant byte address 0x4 - core index']
  #allocation1 [shape = 'u32[144,128]{1,0:T(1,128)}', space=vmem, size = 0x12000, scoped, tag = 'internal scratch']
  %s0 = inlined_call_operand.hbm [shape: f32[8,1024], index: 0, kind: input, shape index: {}]
  %s1 = inlined_call_operand.hbm [shape: f32[8,1024], index: 1, kind: input, shape index: {}]
  %s2 = inlined_call_operand.hbm [shape: f32[1,8,512], index: 2, kind: output, shape index: {0}]
  %s3 = inlined_call_operand.hbm [shape: f32[1,8,512], index: 3, kind: output, shape index: {1}]
  %4 = xla_tuple %s2, %s3
  %s5 = sld [smem:[#allocation0]]
  $region38: #{tpu_custom_call.1} parent=0
    _
  %s7 = ssub.s32 1, %s5
  %s8 = scalar_select 0, %s7, %s5
  $region1: #{tpu_custom_call.1} parent=0
    #allocation2 [shape = 'u8[32768]{0}', space=vmem, size = 0x8000, scoped, tag = 'input window, operand 0, single buffered']
    #allocation3 [shape = 's32[1]{0}', space=sflag, size = 0x4, scoped, tag = 'scoped memory for tpu_custom_call.1']
    #allocation4 [shape = 's32[1]{0}', space=sflag, size = 0x4, scoped, tag = 'scoped memory for tpu_custom_call.1']
    #allocation5 [shape = 'u8[32768]{0}', space=vmem, size = 0x8000, scoped, tag = 'input window, operand 1, single buffered']
    #allocation6 [shape = 's32[1]{0}', space=sflag, size = 0x4, scoped, tag = 'scoped memory for tpu_custom_call.1']
    #allocation7 [shape = 'u8[16384]{0}', space=vmem, size = 0x4000, scoped, tag = 'output window, operand 0, single buffered']
    #allocation8 [shape = 'u8[16384]{0}', space=vmem, size = 0x4000, scoped, tag = 'output window, operand 1, single buffered']
    #allocation9 [shape = 's32[1]{0}', space=sflag, size = 0x4, scoped, tag = 'scoped memory for tpu_custom_call.1']
    %9 = vsyncpa [#allocation3], 0
    %10 = vsyncpa [#allocation6], 0
    %11 = vsyncpa [#allocation4], 0
    %12 = vsyncpa [#allocation9], 0
    // Predicated region
    $region2: #{tpu_custom_call.1} parent=1 // pred_check
      _
    $region3: #{tpu_custom_call.1} parent=1 // pred_check_branch
      %14 = sbr.rel (0) target = $region5
    $region4: #{tpu_custom_call.1} parent=1 // pred_region
      %s15 = sadd.s32 0, 0
      %s16 = smul.u32 8, %s15
      %s18 = ssub.s32 1024, 1024
      %19 = vsyncadd [#allocation3], %s18
      %s20 = smul.addr %s16, 128
      %s21 = scalar_lea.hbm %s0, %s20
      %s23 = sshll.u32 [#allocation2], 4
      %s24 = int_to_ptr.vmem [resolvable:$true] %s23
      %26 = dma.hbm_to_vmem [thread:$0]  %s21, 1024, %s24, [#allocation3]
    $region5: #{tpu_custom_call.1} parent=1 // pred_fallthru
      _
    // Predicated region
    $region6: #{tpu_custom_call.1} parent=1 // pred_check
      _
    $region7: #{tpu_custom_call.1} parent=1 // pred_check_branch
      %28 = sbr.rel (0) target = $region9
    $region8: #{tpu_custom_call.1} parent=1 // pred_region
      %s29 = sadd.s32 0, 0
      %s30 = smul.u32 8, %s29
      %s32 = ssub.s32 1024, 1024
      %33 = vsyncadd [#allocation6], %s32
      %s34 = smul.addr %s30, 128
      %s35 = scalar_lea.hbm %s1, %s34
      %s37 = sshll.u32 [#allocation5], 4
      %s38 = int_to_ptr.vmem [resolvable:$true] %s37
      %40 = dma.hbm_to_vmem [thread:$0]  %s35, 1024, %s38, [#allocation6]
    $region9: #{tpu_custom_call.1} parent=1 // pred_fallthru
      _
    // Predicated region
    $region10: #{tpu_custom_call.1} parent=1 // pred_check
      _
    $region11: #{tpu_custom_call.1} parent=1 // pred_check_branch
      %42 = sbr.rel (0) target = $region13
    $region12: #{tpu_custom_call.1} parent=1 // pred_region
      %43 = dma.done [#allocation3], 1024
    $region13: #{tpu_custom_call.1} parent=1 // pred_fallthru
      _
    // Predicated region
    $region14: #{tpu_custom_call.1} parent=1 // pred_check
      _
    $region15: #{tpu_custom_call.1} parent=1 // pred_check_branch
      %45 = sbr.rel (0) target = $region17
    $region16: #{tpu_custom_call.1} parent=1 // pred_region
      %46 = dma.done [#allocation6], 1024
    $region17: #{tpu_custom_call.1} parent=1 // pred_fallthru
      _
    %s47 = sadd.s32 0, 0
    %s48 = smul.u32 8, %s47
    %s49 = sadd.s32 0, 0
    %s50 = smul.u32 8, %s49
    %p51 = scmp.eq.s32.totalorder 0, 0
    // Predicated region
    $region18: #{tpu_custom_call.1} parent=1 // pred_check
      %p52 = pneg %p51
    $region19: #{tpu_custom_call.1} parent=1 // pred_check_branch
      %54 = sbr.rel (%p52) target = $region21
    $region20: #{tpu_custom_call.1} parent=1 // pred_region
      %55 = vst [vmem:[#allocation7] sm:$0xff] 0.0
      %56 = vst [vmem:[#allocation7 + $0x8] sm:$0xff] 0.0
      %57 = vst [vmem:[#allocation7 + $0x10] sm:$0xff] 0.0
      %58 = vst [vmem:[#allocation7 + $0x18] sm:$0xff] 0.0
      %59 = vst [vmem:[#allocation8] sm:$0xff] 0.0
      %60 = vst [vmem:[#allocation8 + $0x8] sm:$0xff] 0.0
      %61 = vst [vmem:[#allocation8 + $0x10] sm:$0xff] 0.0
      %62 = vst [vmem:[#allocation8 + $0x18] sm:$0xff] 0.0
    $region21: #{tpu_custom_call.1} parent=1 // pred_fallthru
      _
    %v63 = vld [vmem:[#allocation7] sm:$0xff]
    %v64 = vld [vmem:[#allocation7 + $0x8] sm:$0xff]
    %v65 = vld [vmem:[#allocation7 + $0x10] sm:$0xff]
    %v66 = vld [vmem:[#allocation7 + $0x18] sm:$0xff]
    %v67 = vld [vmem:[#allocation8] sm:$0xff]
    %v68 = vld [vmem:[#allocation8 + $0x8] sm:$0xff]
    %v69 = vld [vmem:[#allocation8 + $0x10] sm:$0xff]
    %v70 = vld [vmem:[#allocation8 + $0x18] sm:$0xff]
    %v71 = vld [vmem:[#allocation2] sm:$0xff]
    %v72 = vld [vmem:[#allocation2 + $0x8] sm:$0xff]
    %v73 = vld [vmem:[#allocation2 + $0x10] sm:$0xff]
    %v74 = vld [vmem:[#allocation2 + $0x18] sm:$0xff]
    %v75 = vld [vmem:[#allocation5] sm:$0xff]
    %v76 = vld [vmem:[#allocation5 + $0x8] sm:$0xff]
    %v77 = vld [vmem:[#allocation5 + $0x10] sm:$0xff]
    %v78 = vld [vmem:[#allocation5 + $0x18] sm:$0xff]
    %v79 = vmul.f32 %v75, %v71
    %v80 = vmul.f32 %v76, %v72
    %v81 = vmul.f32 %v77, %v73
    %v82 = vmul.f32 %v78, %v74
    %v83 = vadd.f32 %v63, %v79
    %v84 = vadd.f32 %v64, %v80
    %v85 = vadd.f32 %v65, %v81
    %v86 = vadd.f32 %v66, %v82
    %v87 = vadd.f32 %v75, %v71
    %v88 = vadd.f32 %v76, %v72
    %v89 = vadd.f32 %v77, %v73
    %v90 = vadd.f32 %v78, %v74
    %v91 = vadd.f32 %v67, %v87
    %v92 = vadd.f32 %v68, %v88
    %v93 = vadd.f32 %v69, %v89
    %v94 = vadd.f32 %v70, %v90
    %v95 = vld [vmem:[#allocation2 + $0x20] sm:$0xff]
    %v96 = vld [vmem:[#allocation2 + $0x28] sm:$0xff]
    %v97 = vld [vmem:[#allocation2 + $0x30] sm:$0xff]
    %v98 = vld [vmem:[#allocation2 + $0x38] sm:$0xff]
    %v99 = vld [vmem:[#allocation5 + $0x20] sm:$0xff]
    %v100 = vld [vmem:[#allocation5 + $0x28] sm:$0xff]
    %v101 = vld [vmem:[#allocation5 + $0x30] sm:$0xff]
    %v102 = vld [vmem:[#allocation5 + $0x38] sm:$0xff]
    %v103 = vmul.f32 %v99, %v95
    %v104 = vmul.f32 %v100, %v96
    %v105 = vmul.f32 %v101, %v97
    %v106 = vmul.f32 %v102, %v98
    %v107 = vadd.f32 %v83, %v103
    %v108 = vadd.f32 %v84, %v104
    %v109 = vadd.f32 %v85, %v105
    %v110 = vadd.f32 %v86, %v106
    %v111 = vadd.f32 %v99, %v95
    %v112 = vadd.f32 %v100, %v96
    %v113 = vadd.f32 %v101, %v97
    %v114 = vadd.f32 %v102, %v98
    %v115 = vadd.f32 %v91, %v111
    %v116 = vadd.f32 %v92, %v112
    %v117 = vadd.f32 %v93, %v113
    %v118 = vadd.f32 %v94, %v114
    %119 = vst [vmem:[#allocation7] sm:$0xff] %v107
    %120 = vst [vmem:[#allocation7 + $0x8] sm:$0xff] %v108
    %121 = vst [vmem:[#allocation7 + $0x10] sm:$0xff] %v109
    %122 = vst [vmem:[#allocation7 + $0x18] sm:$0xff] %v110
    %123 = vst [vmem:[#allocation8] sm:$0xff] %v115
    %124 = vst [vmem:[#allocation8 + $0x8] sm:$0xff] %v116
    %125 = vst [vmem:[#allocation8 + $0x10] sm:$0xff] %v117
    %126 = vst [vmem:[#allocation8 + $0x18] sm:$0xff] %v118
    // Predicated region
    $region22: #{tpu_custom_call.1} parent=1 // pred_check
      _
    $region23: #{tpu_custom_call.1} parent=1 // pred_check_branch
      %128 = sbr.rel (0) target = $region25
    $region24: #{tpu_custom_call.1} parent=1 // pred_region
      %s130 = ssub.s32 512, 512
      %131 = vsyncadd [#allocation4], %s130
      %s133 = sshll.u32 [#allocation7], 4
      %s134 = int_to_ptr.vmem [resolvable:$true] %s133
      %136 = dma.vmem_to_hbm [thread:$0]  %s134, 512, %s2, [#allocation4]
    $region25: #{tpu_custom_call.1} parent=1 // pred_fallthru
      _
    // Predicated region
    $region26: #{tpu_custom_call.1} parent=1 // pred_check
      _
    $region27: #{tpu_custom_call.1} parent=1 // pred_check_branch
      %138 = sbr.rel (0) target = $region29
    $region28: #{tpu_custom_call.1} parent=1 // pred_region
      %s140 = ssub.s32 512, 512
      %141 = vsyncadd [#allocation9], %s140
      %s143 = sshll.u32 [#allocation8], 4
      %s144 = int_to_ptr.vmem [resolvable:$true] %s143
      %146 = dma.vmem_to_hbm [thread:$0]  %s144, 512, %s3, [#allocation9]
    $region29: #{tpu_custom_call.1} parent=1 // pred_fallthru
      _
    // Predicated region
    $region30: #{tpu_custom_call.1} parent=1 // pred_check
      _
    $region31: #{tpu_custom_call.1} parent=1 // pred_check_branch
      %148 = sbr.rel (0) target = $region33
    $region32: #{tpu_custom_call.1} parent=1 // pred_region
      %149 = dma.done [#allocation4], 512
    $region33: #{tpu_custom_call.1} parent=1 // pred_fallthru
      _
    // Predicated region
    $region34: #{tpu_custom_call.1} parent=1 // pred_check
      _
    $region35: #{tpu_custom_call.1} parent=1 // pred_check_branch
      %151 = sbr.rel (0) target = $region37
    $region36: #{tpu_custom_call.1} parent=1 // pred_region
      %152 = dma.done [#allocation9], 512
    $region37: #{tpu_custom_call.1} parent=1 // pred_fallthru
      _
    %153 = vsyncpa [#allocation3], 1
    %154 = vsyncpa [#allocation6], 1
    %155 = vsyncpa [#allocation4], 1
    %156 = vsyncpa [#allocation9], 1

</llo_original>
